<compile_context>
chip_gen: v7x
topology: tpu7x:2x2x1
jax: 0.10.0
libtpu: 0.0.40
codegen_flags: <defaults>
</compile_context>

<pallas_src>
import functools

import jax
import jax.numpy as jnp
from jax import lax
from jax.experimental import pallas as pl
from jax.experimental.pallas import tpu as pltpu

LANES = 128
MAX_BLOCK_ROWS = 4096  # (4096,128) f32 tile = 2 MiB; 2 inputs x 2 buffers = 8 MiB VMEM


def _num_tensorcores():
    """Best-effort TensorCores-per-device; returns 1 when unknown (v5e/v6e)."""
    try:
        candidates = []
        try:
            candidates.append(pltpu.get_tpu_info())
        except Exception:
            pass
        devs = jax.devices()
        if devs:
            candidates.append(devs[0])
        for obj in candidates:
            for attr in ("num_cores", "core_count", "num_tensorcores",
                         "tensorcores_per_chip", "num_cores_per_chip"):
                v = getattr(obj, attr, None)
                if isinstance(v, int) and not isinstance(v, bool) and v >= 1:
                    return v
    except Exception:
        pass
    return 1


def _dice_partial_kernel(x_ref, y_ref, out_ref, xy_acc, s_acc,
                         *, rows, block_rows, blocks_per_core):
    c = pl.program_id(0)   # core-split axis ("parallel")
    i = pl.program_id(1)   # sequential reduction axis ("arbitrary")

    @pl.when(i == 0)
    def _init():
        xy_acc[...] = jnp.zeros_like(xy_acc)
        s_acc[...] = jnp.zeros_like(s_acc)

    x = x_ref[...].astype(jnp.float32)
    y = y_ref[...].astype(jnp.float32)

    # Global starting row of this (unclamped) block. Fully in-bounds blocks
    # take the cheap path; only the ragged boundary block (and the clamped
    # duplicate block on an odd core split) pays for a mask.
    start_row = (c * blocks_per_core + i) * block_rows
    is_full = start_row + block_rows <= rows

    @pl.when(is_full)
    def _acc_full():
        xy_acc[...] += jnp.sum(x * y, axis=0, keepdims=True)
        s_acc[...] += jnp.sum(x + y, axis=0, keepdims=True)

    @pl.when(jnp.logical_not(is_full))
    def _acc_masked():
        row_ids = lax.broadcasted_iota(jnp.int32, x.shape, 0)
        valid = (start_row + row_ids) < rows
        xm = jnp.where(valid, x, 0.0)
        ym = jnp.where(valid, y, 0.0)
        xy_acc[...] += jnp.sum(xm * ym, axis=0, keepdims=True)
        s_acc[...] += jnp.sum(xm + ym, axis=0, keepdims=True)

    @pl.when(i == pl.num_programs(1) - 1)
    def _finalize():
        # single lane-dense (1, 2, 128) partial-output write per core
        both = jnp.concatenate([xy_acc[...], s_acc[...]], axis=0)  # (2, LANES)
        out_ref[...] = both.reshape(1, 2, LANES)


def dice_loss(x, y):
    assert x.shape == y.shape
    n = int(x.size)

    xf = x.reshape(-1)
    yf = y.reshape(-1)
    rows = n // LANES
    rem = n - rows * LANES

    xy_sum = jnp.float32(0.0)
    s_sum = jnp.float32(0.0)

    if rem:
        # Ragged lane tail (< 128 elements): tiny jnp reduction in the wrapper
        # instead of jnp.pad, which would copy the entire flattened input.
        tx = xf[rows * LANES:].astype(jnp.float32)
        ty = yf[rows * LANES:].astype(jnp.float32)
        xy_sum = xy_sum + jnp.sum(tx * ty)
        s_sum = s_sum + jnp.sum(tx) + jnp.sum(ty)

    if rows > 0:
        # Lane-dense (rows, 128) view in the NATIVE dtype (no upcast).
        # TODO(synk): for inputs whose trailing dims aren't lane-aligned this
        # flatten/reshape may still force one tiled-layout relayout copy; a
        # fully copy-free path would collapse leading dims only and mask lanes
        # in-kernel.
        x2 = xf[:rows * LANES].reshape(rows, LANES)
        y2 = yf[:rows * LANES].reshape(rows, LANES)

        block_rows = rows if rows <= MAX_BLOCK_ROWS else MAX_BLOCK_ROWS
        total_blocks = pl.cdiv(rows, block_rows)

        # 2-way core split only when the device reports >1 TensorCore (v7x /
        # megacore); 1-TC v5e/v6e keep a plain sequential reduction grid.
        ncores = max(1, min(_num_tensorcores(), 2, total_blocks))
        bpc = pl.cdiv(total_blocks, ncores)

        def in_map(c, i):
            # clamp so an odd block count never indexes past the last block;
            # the duplicated block's contribution is masked to zero in-kernel.
            return (jnp.minimum(c * bpc + i, total_blocks - 1), 0)

        kernel = functools.partial(
            _dice_partial_kernel, rows=rows, block_rows=block_rows,
            blocks_per_core=bpc)

        # TODO(synk): on v7x, verify the "parallel" axis is megacore-sharded;
        # if not, switch axis 0 to pltpu.CORE_PARALLEL.
        part = pl.pallas_call(
            kernel,
            out_shape=jax.ShapeDtypeStruct((ncores, 2, LANES), jnp.float32),
            grid_spec=pltpu.PrefetchScalarGridSpec(
                num_scalar_prefetch=0,
                grid=(ncores, bpc),
                in_specs=[pl.BlockSpec((block_rows, LANES), in_map),
                          pl.BlockSpec((block_rows, LANES), in_map)],
                out_specs=pl.BlockSpec((1, 2, LANES), lambda c, i: (c, 0, 0)),
                scratch_shapes=[pltpu.VMEM((1, LANES), jnp.float32)] * 2,
            ),
            compiler_params=pltpu.CompilerParams(
                dimension_semantics=("parallel", "arbitrary"),
                vmem_limit_bytes=32 * 1024 * 1024),
        )(x2, y2)

        xy_sum = xy_sum + jnp.sum(part[:, 0, :])
        s_sum = s_sum + jnp.sum(part[:, 1, :])

    return 1.0 - (2.0 * xy_sum + 1.0) / (s_sum + 1.0)


def _reference(x, y):
    xf = x.astype(jnp.float32)
    yf = y.astype(jnp.float32)
    return 1.0 - (2.0 * jnp.sum(xf * yf) + 1.0) / (jnp.sum(xf) + jnp.sum(yf) + 1.0)


if __name__ == "__main__":
    key = jax.random.PRNGKey(0)
    kx, ky = jax.random.split(key)
    # PyTorch-style NCHW inputs (soft predictions / targets in [0, 1])
    x = jax.random.uniform(kx, (2, 4, 16, 16), dtype=jnp.float32)
    y = jax.random.uniform(ky, (2, 4, 16, 16), dtype=jnp.float32)

    loss = jax.block_until_ready(jax.jit(dice_loss)(x, y))
    ref = jax.block_until_ready(_reference(x, y))
    assert jnp.allclose(loss, ref, rtol=1e-5, atol=1e-5), (loss, ref)
    print("KERNEL_OK")
</pallas_src>

<mosaic_0001>
module attributes {stable_mosaic.version = 11 : i64} {
  func.func @_dice_partial_kernel(%arg0: i32, %arg1: i32, %arg2: memref<16x128xf32, #tpu.memory_space<vmem>>, %arg3: memref<16x128xf32, #tpu.memory_space<vmem>>, %arg4: memref<1x2x128xf32, #tpu.memory_space<vmem>>, %arg5: memref<1x128xf32, #tpu.memory_space<vmem>>, %arg6: memref<1x128xf32, #tpu.memory_space<vmem>>) attributes {dimension_semantics = [#tpu.dimension_semantics<parallel>, #tpu.dimension_semantics<arbitrary>], iteration_bounds = array<i64: 1, 1>, scalar_prefetch = 0 : i64, scratch_operands = 2 : i64, tpu.core_type = #tpu.core_type<tc>, window_params = [{transform_indices = @transform_0, window_bounds = array<i64: 16, 128>}, {transform_indices = @transform_1, window_bounds = array<i64: 16, 128>}, {transform_indices = @transform_2, window_bounds = array<i64: 1, 2, 128>}]} {
    %c0_i32 = arith.constant 0 : i32
    %0 = arith.cmpi eq, %arg1, %c0_i32 : i32
    %1 = arith.extui %0 : i1 to i32
    %c0_i32_0 = arith.constant 0 : i32
    %2 = arith.cmpi ne, %1, %c0_i32_0 : i32
    scf.if %2 {
      %cst = arith.constant 0.000000e+00 : f32
      %18 = vector.broadcast %cst : f32 to vector<1x128xf32>
      %c0_10 = arith.constant 0 : index
      %c0_11 = arith.constant 0 : index
      %19 = vector.load %arg5[%c0_10, %c0_11] : memref<1x128xf32, #tpu.memory_space<vmem>>, vector<1x128xf32>
      tpu.vector_store %arg5[%c0_10, %c0_11], %18 {strides = array<i32>} : memref<1x128xf32, #tpu.memory_space<vmem>>, vector<1x128xf32>,
      %cst_12 = arith.constant 0.000000e+00 : f32
      %20 = vector.broadcast %cst_12 : f32 to vector<1x128xf32>
      %c0_13 = arith.constant 0 : index
      %c0_14 = arith.constant 0 : index
      %21 = vector.load %arg6[%c0_13, %c0_14] : memref<1x128xf32, #tpu.memory_space<vmem>>, vector<1x128xf32>
      tpu.vector_store %arg6[%c0_13, %c0_14], %20 {strides = array<i32>} : memref<1x128xf32, #tpu.memory_space<vmem>>, vector<1x128xf32>,
    } else {
    }
    %c0 = arith.constant 0 : index
    %c0_1 = arith.constant 0 : index
    %3 = vector.load %arg2[%c0, %c0_1] : memref<16x128xf32, #tpu.memory_space<vmem>>, vector<16x128xf32>
    %c0_2 = arith.constant 0 : index
    %c0_3 = arith.constant 0 : index
    %4 = vector.load %arg3[%c0_2, %c0_3] : memref<16x128xf32, #tpu.memory_space<vmem>>, vector<16x128xf32>
    %c1_i32 = arith.constant 1 : i32
    %5 = arith.muli %arg0, %c1_i32 : i32
    %6 = arith.addi %5, %arg1 : i32
    %c16_i32 = arith.constant 16 : i32
    %7 = arith.muli %6, %c16_i32 : i32
    %c16_i32_4 = arith.constant 16 : i32
    %8 = arith.addi %7, %c16_i32_4 : i32
    %c16_i32_5 = arith.constant 16 : i32
    %9 = arith.cmpi sle, %8, %c16_i32_5 : i32
    %10 = arith.extui %9 : i1 to i32
    %c0_i32_6 = arith.constant 0 : i32
    %11 = arith.cmpi ne, %10, %c0_i32_6 : i32
    scf.if %11 {
      %c0_10 = arith.constant 0 : index
      %c0_11 = arith.constant 0 : index
      %18 = vector.load %arg5[%c0_10, %c0_11] : memref<1x128xf32, #tpu.memory_space<vmem>>, vector<1x128xf32>
      %19 = arith.mulf %3, %4 : vector<16x128xf32>
      %cst = arith.constant dense<0.000000e+00> : vector<128xf32>
      %20 = vector.multi_reduction <add>, %19, %cst [0] : vector<16x128xf32> to vector<128xf32>
      %21 = vector.shape_cast %20 : vector<128xf32> to vector<1x128xf32>
      %22 = arith.addf %18, %21 : vector<1x128xf32>
      %c0_12 = arith.constant 0 : index
      %c0_13 = arith.constant 0 : index
      %23 = vector.load %arg5[%c0_12, %c0_13] : memref<1x128xf32, #tpu.memory_space<vmem>>, vector<1x128xf32>
      tpu.vector_store %arg5[%c0_12, %c0_13], %22 {strides = array<i32>} : memref<1x128xf32, #tpu.memory_space<vmem>>, vector<1x128xf32>,
      %c0_14 = arith.constant 0 : index
      %c0_15 = arith.constant 0 : index
      %24 = vector.load %arg6[%c0_14, %c0_15] : memref<1x128xf32, #tpu.memory_space<vmem>>, vector<1x128xf32>
      %25 = arith.addf %3, %4 : vector<16x128xf32>
      %cst_16 = arith.constant dense<0.000000e+00> : vector<128xf32>
      %26 = vector.multi_reduction <add>, %25, %cst_16 [0] : vector<16x128xf32> to vector<128xf32>
      %27 = vector.shape_cast %26 : vector<128xf32> to vector<1x128xf32>
      %28 = arith.addf %24, %27 : vector<1x128xf32>
      %c0_17 = arith.constant 0 : index
      %c0_18 = arith.constant 0 : index
      %29 = vector.load %arg6[%c0_17, %c0_18] : memref<1x128xf32, #tpu.memory_space<vmem>>, vector<1x128xf32>
      tpu.vector_store %arg6[%c0_17, %c0_18], %28 {strides = array<i32>} : memref<1x128xf32, #tpu.memory_space<vmem>>, vector<1x128xf32>,
    } else {
    }
    %true = arith.constant true
    %12 = arith.xori %9, %true : i1
    %13 = arith.extui %12 : i1 to i32
    %c0_i32_7 = arith.constant 0 : i32
    %14 = arith.cmpi ne, %13, %c0_i32_7 : i32
    scf.if %14 {
      %18 = tpu.iota {dimensions = array<i32: 0>} : vector<16x128xi32>
      %19 = vector.broadcast %7 : i32 to vector<16x128xi32>
      %20 = arith.addi %19, %18 : vector<16x128xi32>
      %c16_i32_10 = arith.constant 16 : i32
      %21 = vector.broadcast %c16_i32_10 : i32 to vector<16x128xi32>
      %22 = arith.cmpi slt, %20, %21 : vector<16x128xi32>
      %cst = arith.constant 0.000000e+00 : f32
      %23 = vector.broadcast %cst : f32 to vector<16x128xf32>
      %24 = arith.select %22, %3, %23 : vector<16x128xi1>, vector<16x128xf32>
      %cst_11 = arith.constant 0.000000e+00 : f32
      %25 = vector.broadcast %cst_11 : f32 to vector<16x128xf32>
      %26 = arith.select %22, %4, %25 : vector<16x128xi1>, vector<16x128xf32>
      %c0_12 = arith.constant 0 : index
      %c0_13 = arith.constant 0 : index
      %27 = vector.load %arg5[%c0_12, %c0_13] : memref<1x128xf32, #tpu.memory_space<vmem>>, vector<1x128xf32>
      %28 = arith.mulf %24, %26 : vector<16x128xf32>
      %cst_14 = arith.constant dense<0.000000e+00> : vector<128xf32>
      %29 = vector.multi_reduction <add>, %28, %cst_14 [0] : vector<16x128xf32> to vector<128xf32>
      %30 = vector.shape_cast %29 : vector<128xf32> to vector<1x128xf32>
      %31 = arith.addf %27, %30 : vector<1x128xf32>
      %c0_15 = arith.constant 0 : index
      %c0_16 = arith.constant 0 : index
      %32 = vector.load %arg5[%c0_15, %c0_16] : memref<1x128xf32, #tpu.memory_space<vmem>>, vector<1x128xf32>
      tpu.vector_store %arg5[%c0_15, %c0_16], %31 {strides = array<i32>} : memref<1x128xf32, #tpu.memory_space<vmem>>, vector<1x128xf32>,
      %c0_17 = arith.constant 0 : index
      %c0_18 = arith.constant 0 : index
      %33 = vector.load %arg6[%c0_17, %c0_18] : memref<1x128xf32, #tpu.memory_space<vmem>>, vector<1x128xf32>
      %34 = arith.addf %24, %26 : vector<16x128xf32>
      %cst_19 = arith.constant dense<0.000000e+00> : vector<128xf32>
      %35 = vector.multi_reduction <add>, %34, %cst_19 [0] : vector<16x128xf32> to vector<128xf32>
      %36 = vector.shape_cast %35 : vector<128xf32> to vector<1x128xf32>
      %37 = arith.addf %33, %36 : vector<1x128xf32>
      %c0_20 = arith.constant 0 : index
      %c0_21 = arith.constant 0 : index
      %38 = vector.load %arg6[%c0_20, %c0_21] : memref<1x128xf32, #tpu.memory_space<vmem>>, vector<1x128xf32>
      tpu.vector_store %arg6[%c0_20, %c0_21], %37 {strides = array<i32>} : memref<1x128xf32, #tpu.memory_space<vmem>>, vector<1x128xf32>,
    } else {
    }
    %c0_i32_8 = arith.constant 0 : i32
    %15 = arith.cmpi eq, %arg1, %c0_i32_8 : i32
    %16 = arith.extui %15 : i1 to i32
    %c0_i32_9 = arith.constant 0 : i32
    %17 = arith.cmpi ne, %16, %c0_i32_9 : i32
    scf.if %17 {
      %c0_10 = arith.constant 0 : index
      %c0_11 = arith.constant 0 : index
      %18 = vector.load %arg5[%c0_10, %c0_11] : memref<1x128xf32, #tpu.memory_space<vmem>>, vector<1x128xf32>
      %c0_12 = arith.constant 0 : index
      %c0_13 = arith.constant 0 : index
      %19 = vector.load %arg6[%c0_12, %c0_13] : memref<1x128xf32, #tpu.memory_space<vmem>>, vector<1x128xf32>
      %20 = tpu.concatenate %18, %19 in 0 : vector<1x128xf32>, vector<1x128xf32> -> vector<2x128xf32>
      %21 = vector.shape_cast %20 : vector<2x128xf32> to vector<1x2x128xf32>
      %c0_14 = arith.constant 0 : index
      %c0_15 = arith.constant 0 : index
      %c0_16 = arith.constant 0 : index
      %22 = vector.load %arg4[%c0_14, %c0_15, %c0_16] : memref<1x2x128xf32, #tpu.memory_space<vmem>>, vector<1x2x128xf32>
      tpu.vector_store %arg4[%c0_14, %c0_15, %c0_16], %21 {strides = array<i32>} : memref<1x2x128xf32, #tpu.memory_space<vmem>>, vector<1x2x128xf32>,
    } else {
    }
    return
  }
  func.func @transform_0(%arg0: i32, %arg1: i32) -> (i32, i32) {
    %c1_i32 = arith.constant 1 : i32
    %0 = arith.muli %arg0, %c1_i32 : i32
    %1 = arith.addi %0, %arg1 : i32
    %c0_i32 = arith.constant 0 : i32
    %2 = arith.minsi %1, %c0_i32 : i32
    %c0_i32_0 = arith.constant 0 : i32
    %c0_i32_1 = arith.constant 0 : i32
    return %2, %c0_i32_0 : i32, i32
  }
  func.func @transform_1(%arg0: i32, %arg1: i32) -> (i32, i32) {
    %c1_i32 = arith.constant 1 : i32
    %0 = arith.muli %arg0, %c1_i32 : i32
    %1 = arith.addi %0, %arg1 : i32
    %c0_i32 = arith.constant 0 : i32
    %2 = arith.minsi %1, %c0_i32 : i32
    %c0_i32_0 = arith.constant 0 : i32
    %c0_i32_1 = arith.constant 0 : i32
    return %2, %c0_i32_0 : i32, i32
  }
  func.func @transform_2(%arg0: i32, %arg1: i32) -> (i32, i32, i32) {
    %c0_i32 = arith.constant 0 : i32
    %c0_i32_0 = arith.constant 0 : i32
    %c0_i32_1 = arith.constant 0 : i32
    return %arg0, %c0_i32, %c0_i32_0 : i32, i32, i32
  }
}

</mosaic_0001>

<llo_original>
// kernel: dice_loss.1
$region0: #{dice_loss.1}
  #allocation0 [shape = 'u32[]', space=smem, size = 0x4, offset = 0x4, fixed_abs, tag = 'smem constant byte address 0x4 - core index']
  #allocation1 [shape = 'u32[144,128]{1,0:T(1,128)}', space=vmem, size = 0x12000, scoped, tag = 'internal scratch']
  #allocation2 [shape = 'f32[1,128]{1,0:T(1,128)}', space=vmem, size = 0x200, scoped, tag = 'scratch operand']
  #allocation3 [shape = 'f32[1,128]{1,0:T(1,128)}', space=vmem, size = 0x200, scoped, tag = 'scratch operand']
  %s0 = inlined_call_operand.vmem [shape: f32[16,128], index: 0, kind: input, shape index: {}]
  %s1 = inlined_call_operand.vmem [shape: f32[16,128], index: 1, kind: input, shape index: {}]
  %s2 = inlined_call_operand.vmem [shape: f32[1,2,128], index: 2, kind: output, shape index: {}]
  %s3 = sld [smem:[#allocation0]]
  $region34: #{dice_loss.1} parent=0
    _
  %s5 = ssub.s32 1, %s3
  %s6 = scalar_select 0, %s5, %s3
  // Predicated region
  $region2: #{dice_loss.1} parent=0 // pred_check
    _
  $region3: #{dice_loss.1} parent=0 // pred_check_branch
    %8 = sbr.rel (0) target = $region5
  $region4: #{dice_loss.1} parent=0 // pred_region
    %s9 = sadd.s32 0, 0
    %p10 = scmp.lt.s32.totalorder %s9, 0
    %s11 = scalar_select %p10, %s9, 0
    %s12 = smul.u32 2, %s11
    %p13 = scmp.lt.s32.totalorder %s12, 1
    %s14 = scalar_select %p13, %s12, 1
    %s15 = smul.addr %s14, 8
    %s16 = scalar_lea.vmem %s0, %s15
    %s17 = sadd.s32 0, 0
    %p18 = scmp.lt.s32.totalorder %s17, 0
    %s19 = scalar_select %p18, %s17, 0
    %s20 = smul.u32 2, %s19
  $region5: #{dice_loss.1} parent=0 // pred_fallthru
    _
  // Predicated region
  $region6: #{dice_loss.1} parent=0 // pred_check
    _
  $region7: #{dice_loss.1} parent=0 // pred_check_branch
    %22 = sbr.rel (0) target = $region9
  $region8: #{dice_loss.1} parent=0 // pred_region
    %s23 = sadd.s32 0, 0
    %p24 = scmp.lt.s32.totalorder %s23, 0
    %s25 = scalar_select %p24, %s23, 0
    %s26 = smul.u32 2, %s25
    %p27 = scmp.lt.s32.totalorder %s26, 1
    %s28 = scalar_select %p27, %s26, 1
    %s29 = smul.addr %s28, 8
    %s30 = scalar_lea.vmem %s1, %s29
    %s31 = sadd.s32 0, 0
    %p32 = scmp.lt.s32.totalorder %s31, 0
    %s33 = scalar_select %p32, %s31, 0
    %s34 = smul.u32 2, %s33
  $region9: #{dice_loss.1} parent=0 // pred_fallthru
    _
  %s35 = sadd.s32 0, 0
  %p36 = scmp.lt.s32.totalorder %s35, 0
  %s37 = scalar_select %p36, %s35, 0
  %s38 = smul.u32 2, %s37
  %p39 = scmp.lt.s32.totalorder %s38, 1
  %s40 = scalar_select %p39, %s38, 1
  %s41 = smul.addr %s40, 8
  %s42 = scalar_lea.vmem %s0, %s41
  %s43 = sadd.s32 0, 0
  %p44 = scmp.lt.s32.totalorder %s43, 0
  %s45 = scalar_select %p44, %s43, 0
  %s46 = smul.u32 2, %s45
  %p47 = scmp.lt.s32.totalorder %s46, 1
  %s48 = scalar_select %p47, %s46, 1
  %s49 = smul.addr %s48, 8
  %s50 = scalar_lea.vmem %s1, %s49
  %s51 = sadd.s32 0, 0
  %p52 = scmp.lt.s32.totalorder %s51, 0
  %s53 = scalar_select %p52, %s51, 0
  %s54 = smul.u32 2, %s53
  %p55 = scmp.lt.s32.totalorder %s54, 1
  %s56 = scalar_select %p55, %s54, 1
  %s57 = smul.addr %s56, 8
  %s58 = scalar_lea.vmem %s0, %s57
  %s59 = sadd.s32 0, 0
  %p60 = scmp.lt.s32.totalorder %s59, 0
  %s61 = scalar_select %p60, %s59, 0
  %s62 = smul.u32 2, %s61
  %s63 = sadd.s32 0, 0
  %p64 = scmp.lt.s32.totalorder %s63, 0
  %s65 = scalar_select %p64, %s63, 0
  %s66 = smul.u32 2, %s65
  %p67 = scmp.lt.s32.totalorder %s66, 1
  %s68 = scalar_select %p67, %s66, 1
  %s69 = smul.addr %s68, 8
  %s70 = scalar_lea.vmem %s1, %s69
  %s71 = sadd.s32 0, 0
  %p72 = scmp.lt.s32.totalorder %s71, 0
  %s73 = scalar_select %p72, %s71, 0
  %s74 = smul.u32 2, %s73
  %p75 = scmp.eq.s32.totalorder 0, 0
  // Predicated region
  $region10: #{dice_loss.1} parent=0 // pred_check
    %p76 = pneg %p75
  $region11: #{dice_loss.1} parent=0 // pred_check_branch
    %78 = sbr.rel (%p76) target = $region13
  $region12: #{dice_loss.1} parent=0 // pred_region
    %79 = vst [vmem:[#allocation2] sm:$0x1] 0.0
    %80 = vst [vmem:[#allocation3] sm:$0x1] 0.0
  $region13: #{dice_loss.1} parent=0 // pred_fallthru
    _
  %v81 = vld [vmem:[%s58] sm:$0xff]
  %v82 = vld [vmem:[%s58 + $0x8] sm:$0xff]
  %v83 = vld [vmem:[%s70] sm:$0xff]
  %v84 = vld [vmem:[%s70 + $0x8] sm:$0xff]
  %s85 = sadd.s32 0, 0
  %s86 = smul.u32 %s85, 16
  %s87 = sadd.s32 %s86, 16
  %p88 = scmp.le.s32.totalorder %s87, 16
  // Predicated region
  $region14: #{dice_loss.1} parent=0 // pred_check
    %p89 = pneg %p88
  $region15: #{dice_loss.1} parent=0 // pred_check_branch
    %91 = sbr.rel (%p89) target = $region17
  $region16: #{dice_loss.1} parent=0 // pred_region
    %v92 = vld [vmem:[#allocation2] sm:$0x1]
    %v93 = vmul.f32 %v81, %v83
    %v94 = vmul.f32 %v82, %v84
    %v95 = vadd.f32 %v93, %v94
    %v96 = vrot.slane %v95, 4
    %v97 = vadd.f32 %v95, %v96
    %v98 = vrot.slane %v97, 2
    %v99 = vadd.f32 %v97, %v98
    %v100 = vrot.slane %v99, 1
    %v101 = vadd.f32 %v99, %v100
    %v102 = vadd.f32 %v92, %v101
    %103 = vst [vmem:[#allocation2] sm:$0x1] %v102
    %v104 = vld [vmem:[#allocation3] sm:$0x1]
    %v105 = vadd.f32 %v81, %v83
    %v106 = vadd.f32 %v82, %v84
    %v107 = vadd.f32 %v105, %v106
    %v108 = vrot.slane %v107, 4
    %v109 = vadd.f32 %v107, %v108
    %v110 = vrot.slane %v109, 2
    %v111 = vadd.f32 %v109, %v110
    %v112 = vrot.slane %v111, 1
    %v113 = vadd.f32 %v111, %v112
    %v114 = vadd.f32 %v104, %v113
    %115 = vst [vmem:[#allocation3] sm:$0x1] %v114
  $region17: #{dice_loss.1} parent=0 // pred_fallthru
    _
  %p116 = scmp.gt.s32.totalorder %s87, 16
  // Predicated region
  $region18: #{dice_loss.1} parent=0 // pred_check
    %p117 = pneg %p116
  $region19: #{dice_loss.1} parent=0 // pred_check_branch
    %119 = sbr.rel (%p117) target = $region21
  $region20: #{dice_loss.1} parent=0 // pred_region
    %v120 = vlaneseq
    %v121 = vshrl.u32 %v120, 7
    %v122 = vadd.s32 %v121, 8
    %v123 = vstv %s86
    %v124 = vadd.s32 %v123, %v121
    %v125 = vadd.s32 %v123, %v122
    %vm126 = vcmp.lt.s32.totalorder %v124, 16
    %vm127 = vcmp.lt.s32.totalorder %v125, 16
    %v128 = vsel %vm126, %v81, 0.0
    %v129 = vsel %vm127, %v82, 0.0
    %v130 = vsel %vm126, %v83, 0.0
    %v131 = vsel %vm127, %v84, 0.0
    %v132 = vld [vmem:[#allocation2] sm:$0x1]
    %v133 = vmul.f32 %v128, %v130
    %v134 = vmul.f32 %v129, %v131
    %v135 = vadd.f32 %v133, %v134
    %v136 = vrot.slane %v135, 4
    %v137 = vadd.f32 %v135, %v136
    %v138 = vrot.slane %v137, 2
    %v139 = vadd.f32 %v137, %v138
    %v140 = vrot.slane %v139, 1
    %v141 = vadd.f32 %v139, %v140
    %v142 = vadd.f32 %v132, %v141
    %143 = vst [vmem:[#allocation2] sm:$0x1] %v142
    %v144 = vld [vmem:[#allocation3] sm:$0x1]
    %v145 = vadd.f32 %v128, %v130
    %v146 = vadd.f32 %v129, %v131
    %v147 = vadd.f32 %v145, %v146
    %v148 = vrot.slane %v147, 4
    %v149 = vadd.f32 %v147, %v148
    %v150 = vrot.slane %v149, 2
    %v151 = vadd.f32 %v149, %v150
    %v152 = vrot.slane %v151, 1
    %v153 = vadd.f32 %v151, %v152
    %v154 = vadd.f32 %v144, %v153
    %155 = vst [vmem:[#allocation3] sm:$0x1] %v154
  $region21: #{dice_loss.1} parent=0 // pred_fallthru
    _
  // Predicated region
  $region22: #{dice_loss.1} parent=0 // pred_check
    %p156 = pneg %p75
  $region23: #{dice_loss.1} parent=0 // pred_check_branch
    %158 = sbr.rel (%p156) target = $region25
  $region24: #{dice_loss.1} parent=0 // pred_region
    %v159 = vld [vmem:[#allocation2] sm:$0x1]
    %v160 = vld [vmem:[#allocation3] sm:$0x1]
    %v162 = vlaneseq
    %v163 = vshrl.u32 %v162, 7
    %v164 = vsub.s32 0, %v163
    %v165 = vrot.slane %v160, %v164
    %vm167 = vcmask 1040384
    %v168 = vsel %vm167, %v159, %v165
    %169 = vst [vmem:[%s2] sm:$0x3] %v168
  $region25: #{dice_loss.1} parent=0 // pred_fallthru
    _
  // Predicated region
  $region26: #{dice_loss.1} parent=0 // pred_check
    _
  $region27: #{dice_loss.1} parent=0 // pred_check_branch
    %171 = sbr.rel (0) target = $region29
  $region28: #{dice_loss.1} parent=0 // pred_region
    _
  $region29: #{dice_loss.1} parent=0 // pred_fallthru
    _
  // Predicated region
  $region30: #{dice_loss.1} parent=0 // pred_check
    _
  $region31: #{dice_loss.1} parent=0 // pred_check_branch
    %173 = sbr.rel (0) target = $region33
  $region32: #{dice_loss.1} parent=0 // pred_region
    _
  $region33: #{dice_loss.1} parent=0 // pred_fallthru
    _

</llo_original>
